<compile_context>
chip_gen: v5e
topology: v5e:2x2
jax: 0.10.0
libtpu: 0.0.40
codegen_flags: <defaults>
</compile_context>

<pallas_src>
import functools

import jax
import jax.numpy as jnp
import numpy as np
from jax import lax
from jax.experimental import pallas as pl
from jax.experimental.pallas import tpu as pltpu


# ---------------------------------------------------------------------------
# Kernel
# ---------------------------------------------------------------------------
def _layernorm(x, gamma, beta, eps=1e-5):
    mu = jnp.mean(x, axis=-1, keepdims=True)
    var = jnp.mean((x - mu) ** 2, axis=-1, keepdims=True)
    return (x - mu) * lax.rsqrt(var + eps) * gamma + beta


def blockformer_kernel(
    x_ref,        # (B*S, E) activations
    mask_ref,     # (B, S) key mask {0,1}
    vec_ref,      # (4, 128) packed LN/bias row vectors
    wbig_ref,     # (E, 3E + E + Hd) = [Wqkv | Wo | W1]
    w2_ref,       # (Hd, E)
    out_ref,      # (B*S, E)
    *, batch, seq, num_heads, head_dim, hidden,
):
    f32 = jnp.float32
    emb = num_heads * head_dim
    e3 = 3 * emb

    x = x_ref[...].astype(f32)                                   # (B*S, E)

    # --- packed row-vector parameters (single DMA, single vreg) ---
    vec = vec_ref[...].astype(f32)                               # (4, 128)
    ln1_g = vec[0:1, 0:emb]
    ln1_b = vec[0:1, emb:2 * emb]
    ln2_g = vec[0:1, 2 * emb:3 * emb]
    ln2_b = vec[0:1, 3 * emb:4 * emb]
    b_o = vec[1:2, 0:emb]
    b_mlp2 = vec[1:2, emb:2 * emb]
    bqkv = vec[2:3, 0:e3]
    b1 = vec[3:4, 0:hidden]

    # --- packed weight slab (single DMA) ---
    wbig = wbig_ref[...].astype(f32)                             # (E, 4E+Hd)
    wqkv = wbig[:, 0:e3]                                         # (E, 3E)
    wo = wbig[:, e3:e3 + emb]                                    # (E, E)
    w1 = wbig[:, e3 + emb:e3 + emb + hidden]                     # (E, Hd)
    w2 = w2_ref[...].astype(f32)                                 # (Hd, E)

    # additive key mask (hoisted): 0 for valid keys, -1e6 for padded keys.
    # NOTE: a fully-padded row would yield a uniform softmax, not zeros (latent edge case).
    neg_bias = (mask_ref[...].astype(f32) - 1.0) * 1e6           # (B, S)

    # ----- attention branch: dropout1(mha(norm1(X), mask)) + X -----
    xn = _layernorm(x, ln1_g, ln1_b)

    # one fused QKV matmul: (B*S, E) @ (E, 3E)
    qkv = jnp.dot(xn, wqkv, preferred_element_type=f32) + bqkv
    q = qkv[:, 0:emb]
    k = qkv[:, emb:2 * emb]
    v = qkv[:, 2 * emb:e3]

    scale = 1.0 / float(np.sqrt(head_dim))
    contract_last = (((1,), (1,)), ((), ()))     # q @ k^T without an explicit transpose (no XLU)

    # stack all (b, h) score blocks row-wise -> ONE softmax for the whole batch
    score_blocks = []
    for b in range(batch):                       # static unroll (B, H tiny); use fori_loop at scale
        rows = slice(b * seq, (b + 1) * seq)
        bias_b = neg_bias[b:b + 1, :]            # (1, S) broadcast over queries
        for h in range(num_heads):
            cols = slice(h * head_dim, (h + 1) * head_dim)
            s = lax.dot_general(q[rows, cols], k[rows, cols], contract_last,
                                preferred_element_type=f32) * scale + bias_b      # (S, S)
            score_blocks.append(s)
    scores = jnp.concatenate(score_blocks, axis=0)               # (B*H*S, S)
    scores = scores - jnp.max(scores, axis=-1, keepdims=True)    # stable softmax
    p = jnp.exp(scores)
    p = p / jnp.sum(p, axis=-1, keepdims=True)                   # exact divide (correctness fix)

    # P @ V per (b, h); lane-concat heads, row-concat batches, then ONE W_o matmul
    batch_rows = []
    for b in range(batch):
        rows = slice(b * seq, (b + 1) * seq)
        heads = []
        for h in range(num_heads):
            cols = slice(h * head_dim, (h + 1) * head_dim)
            blk = (b * num_heads + h) * seq
            ph = p[blk:blk + seq, :]                                             # (S, S)
            heads.append(jnp.dot(ph, v[rows, cols], preferred_element_type=f32))  # (S, Dh)
        batch_rows.append(jnp.concatenate(heads, axis=-1))       # (S, E) lane-concat
    attn_in = jnp.concatenate(batch_rows, axis=0)                # (B*S, E) row-concat
    attn = jnp.dot(attn_in, wo, preferred_element_type=f32) + b_o

    # dropout1 is identity at inference time.
    # TODO(synk): mha.attn.skipconnection / mha.attn.retrieve (MIMO superposition bind/unbind)
    # are not defined in the provided source; treated as identity here.
    x1 = attn + x

    # ----- MLP branch: mlpblock(norm2(X)) + X -----
    xn2 = _layernorm(x1, ln2_g, ln2_b)
    h1 = jnp.maximum(jnp.dot(xn2, w1, preferred_element_type=f32) + b1, 0.0)     # ReLU
    mlp = jnp.dot(h1, w2, preferred_element_type=f32) + b_mlp2
    out_ref[...] = (mlp + x1).astype(out_ref.dtype)


# ---------------------------------------------------------------------------
# Host wrapper
# ---------------------------------------------------------------------------
def blockformer_forward(x, mask, params, *, num_heads, head_dim):
    B, S, E = x.shape
    Hd = params["w1"].shape[1]
    LANE = 128
    # toy-size packing layout; at production sizes (E >= 128) use per-tensor inputs + a
    # flash-style sequence-tile grid instead.
    assert 4 * E <= LANE and Hd <= LANE and 3 * E <= LANE

    x_flat = x.reshape(B * S, E)

    # host-side fusions (free relative to the kernel):
    wqkv = jnp.concatenate([params["wq"], params["wk"], params["wv"]], axis=1)   # (E, 3E)
    wbig = jnp.concatenate([wqkv, params["wo"], params["w1"]], axis=1)           # (E, 4E+Hd)

    def pad_row(pieces):
        row = jnp.concatenate(pieces, axis=1)
        return jnp.pad(row, ((0, 0), (0, LANE - row.shape[1])))

    vec = jnp.concatenate([
        pad_row([params["ln1_g"], params["ln1_b"], params["ln2_g"], params["ln2_b"]]),
        pad_row([params["bo"], params["b2"]]),
        pad_row([params["bq"], params["bk"], params["bv"]]),
        pad_row([params["b1"]]),
    ], axis=0)                                                                   # (4, 128)

    kernel = functools.partial(blockformer_kernel, batch=B, seq=S,
                               num_heads=num_heads, head_dim=head_dim, hidden=Hd)

    out_flat = pl.pallas_call(
        kernel,
        out_shape=jax.ShapeDtypeStruct((B * S, E), x.dtype),
        # no grid: single invocation, whole (tiny) operands resident in VMEM, no pipeline
        # double-buffering.  (On v7x at scale: add a "parallel" batch axis + seq-tile axis.)
        in_specs=[pl.BlockSpec(memory_space=pltpu.MemorySpace.VMEM) for _ in range(5)],
        out_specs=pl.BlockSpec(memory_space=pltpu.MemorySpace.VMEM),
    )(x_flat, mask, vec, wbig, params["w2"])

    return out_flat.reshape(B, S, E)


# ---------------------------------------------------------------------------
# Pure-JAX reference (for correctness check)
# ---------------------------------------------------------------------------
def blockformer_ref(x, mask, p, *, num_heads, head_dim):
    def ln(t, g, b):
        mu = t.mean(-1, keepdims=True)
        var = ((t - mu) ** 2).mean(-1, keepdims=True)
        return (t - mu) / jnp.sqrt(var + 1e-5) * g + b

    B, S, E = x.shape
    xn = ln(x, p["ln1_g"], p["ln1_b"])
    q = xn @ p["wq"] + p["bq"]
    k = xn @ p["wk"] + p["bk"]
    v = xn @ p["wv"] + p["bv"]

    def split(t):  # (B,S,E) -> (B,H,S,Dh)
        return t.reshape(B, S, num_heads, head_dim).transpose(0, 2, 1, 3)

    qh, kh, vh = split(q), split(k), split(v)
    s = jnp.einsum("bhqd,bhkd->bhqk", qh, kh) / np.sqrt(head_dim)
    s = s - 1e6 * (1.0 - mask[:, None, None, :])
    pmat = jax.nn.softmax(s, axis=-1)
    a = jnp.einsum("bhqk,bhkd->bhqd", pmat, vh)
    a = a.transpose(0, 2, 1, 3).reshape(B, S, E)
    attn = a @ p["wo"] + p["bo"]
    x1 = attn + x

    xn2 = ln(x1, p["ln2_g"], p["ln2_b"])
    h1 = jnp.maximum(xn2 @ p["w1"] + p["b1"], 0.0)
    mlp = h1 @ p["w2"] + p["b2"]
    return mlp + x1


# ---------------------------------------------------------------------------
# Main
# ---------------------------------------------------------------------------
if __name__ == "__main__":
    # config (small, consistent with the module): embedding_dim=32, num_head=2,
    # head_dim=16, transformer_hidden_dim=64, dropout_prob=0.1 (identity at inference).
    B, S, E = 2, 8, 32
    NUM_HEADS, HEAD_DIM, HIDDEN = 2, 16, 64

    key = jax.random.PRNGKey(0)
    ks = jax.random.split(key, 12)

    def lin_w(k, fan_in, fan_out):
        return jax.random.normal(k, (fan_in, fan_out), jnp.float32) / np.sqrt(fan_in)

    def lin_b(k, fan_out):
        return 0.01 * jax.random.normal(k, (1, fan_out), jnp.float32)

    params = {
        "ln1_g": jnp.ones((1, E), jnp.float32), "ln1_b": jnp.zeros((1, E), jnp.float32),
        "wq": lin_w(ks[0], E, E), "bq": lin_b(ks[1], E),
        "wk": lin_w(ks[2], E, E), "bk": lin_b(ks[3], E),
        "wv": lin_w(ks[4], E, E), "bv": lin_b(ks[5], E),
        "wo": lin_w(ks[6], E, E), "bo": lin_b(ks[7], E),
        "ln2_g": jnp.ones((1, E), jnp.float32), "ln2_b": jnp.zeros((1, E), jnp.float32),
        "w1": lin_w(ks[8], E, HIDDEN), "b1": lin_b(ks[9], HIDDEN),
        "w2": lin_w(ks[10], HIDDEN, E), "b2": lin_b(ks[11], E),
    }

    kx, km = jax.random.split(jax.random.PRNGKey(0), 2)
    x = jax.random.normal(kx, (B, S, E), jnp.float32)
    mask = jnp.ones((B, S), jnp.float32).at[1, -2:].set(0.0)  # pad out last 2 keys of batch 1

    out = blockformer_forward(x, mask, params, num_heads=NUM_HEADS, head_dim=HEAD_DIM)
    out = jax.block_until_ready(out)

    ref = blockformer_ref(x, mask, params, num_heads=NUM_HEADS, head_dim=HEAD_DIM)
    np.testing.assert_allclose(np.asarray(out), np.asarray(ref), rtol=2e-3, atol=2e-3)

    print("KERNEL_OK")
</pallas_src>

<mosaic_0001>
module attributes {stable_mosaic.version = 11 : i64} {
  func.func @blockformer_kernel(%arg0: memref<16x32xf32, #tpu.memory_space<vmem>>, %arg1: memref<2x8xf32, #tpu.memory_space<vmem>>, %arg2: memref<4x128xf32, #tpu.memory_space<vmem>>, %arg3: memref<32x192xf32, #tpu.memory_space<vmem>>, %arg4: memref<64x32xf32, #tpu.memory_space<vmem>>, %arg5: memref<16x32xf32, #tpu.memory_space<vmem>>) attributes {dimension_semantics = [], scalar_prefetch = 0 : i64, scratch_operands = 0 : i64, tpu.core_type = #tpu.core_type<tc>} {
    %c0 = arith.constant 0 : index
    %c0_0 = arith.constant 0 : index
    %0 = vector.load %arg0[%c0, %c0_0] : memref<16x32xf32, #tpu.memory_space<vmem>>, vector<16x32xf32>
    %c0_1 = arith.constant 0 : index
    %c0_2 = arith.constant 0 : index
    %1 = vector.load %arg2[%c0_1, %c0_2] : memref<4x128xf32, #tpu.memory_space<vmem>>, vector<4x128xf32>
    %2 = vector.extract_strided_slice %1 {offsets = [0, 0], sizes = [1, 32], strides = [1, 1]} : vector<4x128xf32> to vector<1x32xf32>
    %3 = vector.extract_strided_slice %1 {offsets = [0, 32], sizes = [1, 32], strides = [1, 1]} : vector<4x128xf32> to vector<1x32xf32>
    %4 = vector.extract_strided_slice %1 {offsets = [0, 64], sizes = [1, 32], strides = [1, 1]} : vector<4x128xf32> to vector<1x32xf32>
    %5 = vector.extract_strided_slice %1 {offsets = [0, 96], sizes = [1, 32], strides = [1, 1]} : vector<4x128xf32> to vector<1x32xf32>
    %6 = vector.extract_strided_slice %1 {offsets = [1, 0], sizes = [1, 32], strides = [1, 1]} : vector<4x128xf32> to vector<1x32xf32>
    %7 = vector.extract_strided_slice %1 {offsets = [1, 32], sizes = [1, 32], strides = [1, 1]} : vector<4x128xf32> to vector<1x32xf32>
    %8 = vector.extract_strided_slice %1 {offsets = [2, 0], sizes = [1, 96], strides = [1, 1]} : vector<4x128xf32> to vector<1x96xf32>
    %9 = vector.extract_strided_slice %1 {offsets = [3, 0], sizes = [1, 64], strides = [1, 1]} : vector<4x128xf32> to vector<1x64xf32>
    %c0_3 = arith.constant 0 : index
    %c0_4 = arith.constant 0 : index
    %10 = vector.load %arg3[%c0_3, %c0_4] : memref<32x192xf32, #tpu.memory_space<vmem>>, vector<32x192xf32>
    %11 = vector.extract_strided_slice %10 {offsets = [0, 0], sizes = [32, 96], strides = [1, 1]} : vector<32x192xf32> to vector<32x96xf32>
    %12 = vector.extract_strided_slice %10 {offsets = [0, 96], sizes = [32, 32], strides = [1, 1]} : vector<32x192xf32> to vector<32x32xf32>
    %13 = vector.extract_strided_slice %10 {offsets = [0, 128], sizes = [32, 64], strides = [1, 1]} : vector<32x192xf32> to vector<32x64xf32>
    %c0_5 = arith.constant 0 : index
    %c0_6 = arith.constant 0 : index
    %14 = vector.load %arg4[%c0_5, %c0_6] : memref<64x32xf32, #tpu.memory_space<vmem>>, vector<64x32xf32>
    %c0_7 = arith.constant 0 : index
    %c0_8 = arith.constant 0 : index
    %15 = vector.load %arg1[%c0_7, %c0_8] : memref<2x8xf32, #tpu.memory_space<vmem>>, vector<2x8xf32>
    %cst = arith.constant 1.000000e+00 : f32
    %16 = vector.broadcast %cst : f32 to vector<2x8xf32>
    %17 = arith.subf %15, %16 : vector<2x8xf32>
    %cst_9 = arith.constant 1.000000e+06 : f32
    %18 = vector.broadcast %cst_9 : f32 to vector<2x8xf32>
    %19 = arith.mulf %17, %18 : vector<2x8xf32>
    %cst_10 = arith.constant dense<0.000000e+00> : vector<16xf32>
    %20 = vector.multi_reduction <add>, %0, %cst_10 [1] : vector<16x32xf32> to vector<16xf32>
    %21 = vector.shape_cast %20 : vector<16xf32> to vector<16x1xf32>
    %cst_11 = arith.constant 3.200000e+01 : f32
    %22 = vector.broadcast %cst_11 : f32 to vector<16x1xf32>
    %23 = arith.divf %21, %22 : vector<16x1xf32>
    %24 = vector.broadcast %23 : vector<16x1xf32> to vector<16x32xf32>
    %25 = arith.subf %0, %24 : vector<16x32xf32>
    %26 = arith.mulf %25, %25 : vector<16x32xf32>
    %cst_12 = arith.constant dense<0.000000e+00> : vector<16xf32>
    %27 = vector.multi_reduction <add>, %26, %cst_12 [1] : vector<16x32xf32> to vector<16xf32>
    %28 = vector.shape_cast %27 : vector<16xf32> to vector<16x1xf32>
    %cst_13 = arith.constant 3.200000e+01 : f32
    %29 = vector.broadcast %cst_13 : f32 to vector<16x1xf32>
    %30 = arith.divf %28, %29 : vector<16x1xf32>
    %31 = vector.broadcast %23 : vector<16x1xf32> to vector<16x32xf32>
    %32 = arith.subf %0, %31 : vector<16x32xf32>
    %cst_14 = arith.constant 9.99999974E-6 : f32
    %33 = vector.broadcast %cst_14 : f32 to vector<16x1xf32>
    %34 = arith.addf %30, %33 : vector<16x1xf32>
    %35 = math.rsqrt %34 : vector<16x1xf32>
    %36 = vector.broadcast %35 : vector<16x1xf32> to vector<16x32xf32>
    %37 = arith.mulf %32, %36 : vector<16x32xf32>
    %38 = vector.broadcast %2 : vector<1x32xf32> to vector<16x32xf32>
    %39 = arith.mulf %37, %38 : vector<16x32xf32>
    %40 = vector.broadcast %3 : vector<1x32xf32> to vector<16x32xf32>
    %41 = arith.addf %39, %40 : vector<16x32xf32>
    %cst_15 = arith.constant dense<0.000000e+00> : vector<16x96xf32>
    %42 = tpu.matmul %41, %11, %cst_15 {dimension_numbers = #tpu.dot_dimension_numbers<[1], [0], [0], [1], [0, 0, 1, 1], [], []>} : vector<16x32xf32>, vector<32x96xf32>, vector<16x96xf32> -> vector<16x96xf32>
    %43 = vector.broadcast %8 : vector<1x96xf32> to vector<16x96xf32>
    %44 = arith.addf %42, %43 : vector<16x96xf32>
    %45 = vector.extract_strided_slice %44 {offsets = [0, 0], sizes = [16, 32], strides = [1, 1]} : vector<16x96xf32> to vector<16x32xf32>
    %46 = vector.extract_strided_slice %44 {offsets = [0, 32], sizes = [16, 32], strides = [1, 1]} : vector<16x96xf32> to vector<16x32xf32>
    %47 = vector.extract_strided_slice %44 {offsets = [0, 64], sizes = [16, 32], strides = [1, 1]} : vector<16x96xf32> to vector<16x32xf32>
    %48 = vector.extract_strided_slice %19 {offsets = [0, 0], sizes = [1, 8], strides = [1, 1]} : vector<2x8xf32> to vector<1x8xf32>
    %49 = vector.extract_strided_slice %45 {offsets = [0, 0], sizes = [8, 16], strides = [1, 1]} : vector<16x32xf32> to vector<8x16xf32>
    %50 = vector.extract_strided_slice %46 {offsets = [0, 0], sizes = [8, 16], strides = [1, 1]} : vector<16x32xf32> to vector<8x16xf32>
    %cst_16 = arith.constant dense<0.000000e+00> : vector<8x8xf32>
    %51 = tpu.matmul %49, %50, %cst_16 {dimension_numbers = #tpu.dot_dimension_numbers<[1], [1], [0], [0], [0, 0, 1, 0], [], []>} : vector<8x16xf32>, vector<8x16xf32>, vector<8x8xf32> -> vector<8x8xf32>
    %cst_17 = arith.constant 2.500000e-01 : f32
    %52 = vector.broadcast %cst_17 : f32 to vector<8x8xf32>
    %53 = arith.mulf %51, %52 : vector<8x8xf32>
    %54 = vector.broadcast %48 : vector<1x8xf32> to vector<8x8xf32>
    %55 = arith.addf %53, %54 : vector<8x8xf32>
    %56 = vector.extract_strided_slice %45 {offsets = [0, 16], sizes = [8, 16], strides = [1, 1]} : vector<16x32xf32> to vector<8x16xf32>
    %57 = vector.extract_strided_slice %46 {offsets = [0, 16], sizes = [8, 16], strides = [1, 1]} : vector<16x32xf32> to vector<8x16xf32>
    %cst_18 = arith.constant dense<0.000000e+00> : vector<8x8xf32>
    %58 = tpu.matmul %56, %57, %cst_18 {dimension_numbers = #tpu.dot_dimension_numbers<[1], [1], [0], [0], [0, 0, 1, 0], [], []>} : vector<8x16xf32>, vector<8x16xf32>, vector<8x8xf32> -> vector<8x8xf32>
    %cst_19 = arith.constant 2.500000e-01 : f32
    %59 = vector.broadcast %cst_19 : f32 to vector<8x8xf32>
    %60 = arith.mulf %58, %59 : vector<8x8xf32>
    %61 = vector.broadcast %48 : vector<1x8xf32> to vector<8x8xf32>
    %62 = arith.addf %60, %61 : vector<8x8xf32>
    %63 = vector.extract_strided_slice %19 {offsets = [1, 0], sizes = [1, 8], strides = [1, 1]} : vector<2x8xf32> to vector<1x8xf32>
    %64 = vector.extract_strided_slice %45 {offsets = [8, 0], sizes = [8, 16], strides = [1, 1]} : vector<16x32xf32> to vector<8x16xf32>
    %65 = vector.extract_strided_slice %46 {offsets = [8, 0], sizes = [8, 16], strides = [1, 1]} : vector<16x32xf32> to vector<8x16xf32>
    %cst_20 = arith.constant dense<0.000000e+00> : vector<8x8xf32>
    %66 = tpu.matmul %64, %65, %cst_20 {dimension_numbers = #tpu.dot_dimension_numbers<[1], [1], [0], [0], [0, 0, 1, 0], [], []>} : vector<8x16xf32>, vector<8x16xf32>, vector<8x8xf32> -> vector<8x8xf32>
    %cst_21 = arith.constant 2.500000e-01 : f32
    %67 = vector.broadcast %cst_21 : f32 to vector<8x8xf32>
    %68 = arith.mulf %66, %67 : vector<8x8xf32>
    %69 = vector.broadcast %63 : vector<1x8xf32> to vector<8x8xf32>
    %70 = arith.addf %68, %69 : vector<8x8xf32>
    %71 = vector.extract_strided_slice %45 {offsets = [8, 16], sizes = [8, 16], strides = [1, 1]} : vector<16x32xf32> to vector<8x16xf32>
    %72 = vector.extract_strided_slice %46 {offsets = [8, 16], sizes = [8, 16], strides = [1, 1]} : vector<16x32xf32> to vector<8x16xf32>
    %cst_22 = arith.constant dense<0.000000e+00> : vector<8x8xf32>
    %73 = tpu.matmul %71, %72, %cst_22 {dimension_numbers = #tpu.dot_dimension_numbers<[1], [1], [0], [0], [0, 0, 1, 0], [], []>} : vector<8x16xf32>, vector<8x16xf32>, vector<8x8xf32> -> vector<8x8xf32>
    %cst_23 = arith.constant 2.500000e-01 : f32
    %74 = vector.broadcast %cst_23 : f32 to vector<8x8xf32>
    %75 = arith.mulf %73, %74 : vector<8x8xf32>
    %76 = vector.broadcast %63 : vector<1x8xf32> to vector<8x8xf32>
    %77 = arith.addf %75, %76 : vector<8x8xf32>
    %78 = tpu.concatenate %55, %62, %70, %77 in 0 : vector<8x8xf32>, vector<8x8xf32>, vector<8x8xf32>, vector<8x8xf32> -> vector<32x8xf32>
    %cst_24 = arith.constant dense<0xFF800000> : vector<32xf32>
    %79 = vector.multi_reduction <maximumf>, %78, %cst_24 [1] : vector<32x8xf32> to vector<32xf32>
    %80 = vector.shape_cast %79 : vector<32xf32> to vector<32x1xf32>
    %81 = vector.broadcast %80 : vector<32x1xf32> to vector<32x8xf32>
    %82 = arith.subf %78, %81 : vector<32x8xf32>
    %83 = math.exp %82 : vector<32x8xf32>
    %cst_25 = arith.constant dense<0.000000e+00> : vector<32xf32>
    %84 = vector.multi_reduction <add>, %83, %cst_25 [1] : vector<32x8xf32> to vector<32xf32>
    %85 = vector.shape_cast %84 : vector<32xf32> to vector<32x1xf32>
    %86 = vector.broadcast %85 : vector<32x1xf32> to vector<32x8xf32>
    %87 = arith.divf %83, %86 : vector<32x8xf32>
    %88 = vector.extract_strided_slice %87 {offsets = [0, 0], sizes = [8, 8], strides = [1, 1]} : vector<32x8xf32> to vector<8x8xf32>
    %89 = vector.extract_strided_slice %47 {offsets = [0, 0], sizes = [8, 16], strides = [1, 1]} : vector<16x32xf32> to vector<8x16xf32>
    %cst_26 = arith.constant dense<0.000000e+00> : vector<8x16xf32>
    %90 = tpu.matmul %88, %89, %cst_26 {dimension_numbers = #tpu.dot_dimension_numbers<[1], [0], [0], [1], [0, 0, 1, 1], [], []>} : vector<8x8xf32>, vector<8x16xf32>, vector<8x16xf32> -> vector<8x16xf32>
    %91 = vector.extract_strided_slice %87 {offsets = [8, 0], sizes = [8, 8], strides = [1, 1]} : vector<32x8xf32> to vector<8x8xf32>
    %92 = vector.extract_strided_slice %47 {offsets = [0, 16], sizes = [8, 16], strides = [1, 1]} : vector<16x32xf32> to vector<8x16xf32>
    %cst_27 = arith.constant dense<0.000000e+00> : vector<8x16xf32>
    %93 = tpu.matmul %91, %92, %cst_27 {dimension_numbers = #tpu.dot_dimension_numbers<[1], [0], [0], [1], [0, 0, 1, 1], [], []>} : vector<8x8xf32>, vector<8x16xf32>, vector<8x16xf32> -> vector<8x16xf32>
    %94 = tpu.concatenate %90, %93 in 1 : vector<8x16xf32>, vector<8x16xf32> -> vector<8x32xf32>
    %95 = vector.extract_strided_slice %87 {offsets = [16, 0], sizes = [8, 8], strides = [1, 1]} : vector<32x8xf32> to vector<8x8xf32>
    %96 = vector.extract_strided_slice %47 {offsets = [8, 0], sizes = [8, 16], strides = [1, 1]} : vector<16x32xf32> to vector<8x16xf32>
    %cst_28 = arith.constant dense<0.000000e+00> : vector<8x16xf32>
    %97 = tpu.matmul %95, %96, %cst_28 {dimension_numbers = #tpu.dot_dimension_numbers<[1], [0], [0], [1], [0, 0, 1, 1], [], []>} : vector<8x8xf32>, vector<8x16xf32>, vector<8x16xf32> -> vector<8x16xf32>
    %98 = vector.extract_strided_slice %87 {offsets = [24, 0], sizes = [8, 8], strides = [1, 1]} : vector<32x8xf32> to vector<8x8xf32>
    %99 = vector.extract_strided_slice %47 {offsets = [8, 16], sizes = [8, 16], strides = [1, 1]} : vector<16x32xf32> to vector<8x16xf32>
    %cst_29 = arith.constant dense<0.000000e+00> : vector<8x16xf32>
    %100 = tpu.matmul %98, %99, %cst_29 {dimension_numbers = #tpu.dot_dimension_numbers<[1], [0], [0], [1], [0, 0, 1, 1], [], []>} : vector<8x8xf32>, vector<8x16xf32>, vector<8x16xf32> -> vector<8x16xf32>
    %101 = tpu.concatenate %97, %100 in 1 : vector<8x16xf32>, vector<8x16xf32> -> vector<8x32xf32>
    %102 = tpu.concatenate %94, %101 in 0 : vector<8x32xf32>, vector<8x32xf32> -> vector<16x32xf32>
    %cst_30 = arith.constant dense<0.000000e+00> : vector<16x32xf32>
    %103 = tpu.matmul %102, %12, %cst_30 {dimension_numbers = #tpu.dot_dimension_numbers<[1], [0], [0], [1], [0, 0, 1, 1], [], []>} : vector<16x32xf32>, vector<32x32xf32>, vector<16x32xf32> -> vector<16x32xf32>
    %104 = vector.broadcast %6 : vector<1x32xf32> to vector<16x32xf32>
    %105 = arith.addf %103, %104 : vector<16x32xf32>
    %106 = arith.addf %105, %0 : vector<16x32xf32>
    %cst_31 = arith.constant dense<0.000000e+00> : vector<16xf32>
    %107 = vector.multi_reduction <add>, %106, %cst_31 [1] : vector<16x32xf32> to vector<16xf32>
    %108 = vector.shape_cast %107 : vector<16xf32> to vector<16x1xf32>
    %cst_32 = arith.constant 3.200000e+01 : f32
    %109 = vector.broadcast %cst_32 : f32 to vector<16x1xf32>
    %110 = arith.divf %108, %109 : vector<16x1xf32>
    %111 = vector.broadcast %110 : vector<16x1xf32> to vector<16x32xf32>
    %112 = arith.subf %106, %111 : vector<16x32xf32>
    %113 = arith.mulf %112, %112 : vector<16x32xf32>
    %cst_33 = arith.constant dense<0.000000e+00> : vector<16xf32>
    %114 = vector.multi_reduction <add>, %113, %cst_33 [1] : vector<16x32xf32> to vector<16xf32>
    %115 = vector.shape_cast %114 : vector<16xf32> to vector<16x1xf32>
    %cst_34 = arith.constant 3.200000e+01 : f32
    %116 = vector.broadcast %cst_34 : f32 to vector<16x1xf32>
    %117 = arith.divf %115, %116 : vector<16x1xf32>
    %118 = vector.broadcast %110 : vector<16x1xf32> to vector<16x32xf32>
    %119 = arith.subf %106, %118 : vector<16x32xf32>
    %cst_35 = arith.constant 9.99999974E-6 : f32
    %120 = vector.broadcast %cst_35 : f32 to vector<16x1xf32>
    %121 = arith.addf %117, %120 : vector<16x1xf32>
    %122 = math.rsqrt %121 : vector<16x1xf32>
    %123 = vector.broadcast %122 : vector<16x1xf32> to vector<16x32xf32>
    %124 = arith.mulf %119, %123 : vector<16x32xf32>
    %125 = vector.broadcast %4 : vector<1x32xf32> to vector<16x32xf32>
    %126 = arith.mulf %124, %125 : vector<16x32xf32>
    %127 = vector.broadcast %5 : vector<1x32xf32> to vector<16x32xf32>
    %128 = arith.addf %126, %127 : vector<16x32xf32>
    %cst_36 = arith.constant dense<0.000000e+00> : vector<16x64xf32>
    %129 = tpu.matmul %128, %13, %cst_36 {dimension_numbers = #tpu.dot_dimension_numbers<[1], [0], [0], [1], [0, 0, 1, 1], [], []>} : vector<16x32xf32>, vector<32x64xf32>, vector<16x64xf32> -> vector<16x64xf32>
    %130 = vector.broadcast %9 : vector<1x64xf32> to vector<16x64xf32>
    %131 = arith.addf %129, %130 : vector<16x64xf32>
    %cst_37 = arith.constant 0.000000e+00 : f32
    %132 = vector.broadcast %cst_37 : f32 to vector<16x64xf32>
    %133 = arith.maximumf %131, %132 : vector<16x64xf32>
    %cst_38 = arith.constant dense<0.000000e+00> : vector<16x32xf32>
    %134 = tpu.matmul %133, %14, %cst_38 {dimension_numbers = #tpu.dot_dimension_numbers<[1], [0], [0], [1], [0, 0, 1, 1], [], []>} : vector<16x64xf32>, vector<64x32xf32>, vector<16x32xf32> -> vector<16x32xf32>
    %135 = vector.broadcast %7 : vector<1x32xf32> to vector<16x32xf32>
    %136 = arith.addf %134, %135 : vector<16x32xf32>
    %137 = arith.addf %136, %106 : vector<16x32xf32>
    %c0_39 = arith.constant 0 : index
    %c0_40 = arith.constant 0 : index
    %138 = vector.load %arg5[%c0_39, %c0_40] : memref<16x32xf32, #tpu.memory_space<vmem>>, vector<16x32xf32>
    tpu.vector_store %arg5[%c0_39, %c0_40], %137 {strides = array<i32>} : memref<16x32xf32, #tpu.memory_space<vmem>>, vector<16x32xf32>,
    return
  }
}

</mosaic_0001>

<llo_original>
// kernel: tpu_custom_call.1
$region0: #{tpu_custom_call.1}
  #allocation0 [shape = 'u32[]', space=smem, size = 0x4, offset = 0x4, fixed_abs, tag = 'smem constant byte address 0x4 - core index']
  #allocation1 [shape = 'u32[72,128]{1,0:T(1,128)}', space=vmem, size = 0x9000, scoped, tag = 'internal scratch']
  %s0 = inlined_call_operand.vmem [shape: f32[16,32], index: 0, kind: input, shape index: {}]
  %s1 = inlined_call_operand.vmem [shape: f32[2,8], index: 1, kind: input, shape index: {}]
  %s2 = inlined_call_operand.vmem [shape: f32[4,128], index: 2, kind: input, shape index: {}]
  %s3 = inlined_call_operand.vmem [shape: f32[32,192], index: 3, kind: input, shape index: {}]
  %s4 = inlined_call_operand.vmem [shape: f32[64,32], index: 4, kind: input, shape index: {}]
  %s5 = inlined_call_operand.hbm [shape: f32[16,32], index: 5, kind: output, shape index: {}]
  %s6 = sld [smem:[#allocation0]]
  $region30: #{tpu_custom_call.1} parent=0
    _
  %s8 = ssub.s32 1, %s6
  %s9 = scalar_select 0, %s8, %s6
  $region1: #{tpu_custom_call.1} parent=0
    #allocation2 [shape = 'u8[8192]{0}', space=vmem, size = 0x2000, scoped, tag = 'output window, operand 0, single buffered']
    #allocation3 [shape = 's32[1]{0}', space=sflag, size = 0x4, scoped, tag = 'scoped memory for tpu_custom_call.1']
    %10 = vsyncpa [#allocation3], 0
    // Predicated region
    $region2: #{tpu_custom_call.1} parent=1 // pred_check
      _
    $region3: #{tpu_custom_call.1} parent=1 // pred_check_branch
      %12 = sbr.rel (0) target = $region5
    $region4: #{tpu_custom_call.1} parent=1 // pred_region
      _
    $region5: #{tpu_custom_call.1} parent=1 // pred_fallthru
      _
    // Predicated region
    $region6: #{tpu_custom_call.1} parent=1 // pred_check
      _
    $region7: #{tpu_custom_call.1} parent=1 // pred_check_branch
      %14 = sbr.rel (0) target = $region9
    $region8: #{tpu_custom_call.1} parent=1 // pred_region
      _
    $region9: #{tpu_custom_call.1} parent=1 // pred_fallthru
      _
    // Predicated region
    $region10: #{tpu_custom_call.1} parent=1 // pred_check
      _
    $region11: #{tpu_custom_call.1} parent=1 // pred_check_branch
      %16 = sbr.rel (0) target = $region13
    $region12: #{tpu_custom_call.1} parent=1 // pred_region
      _
    $region13: #{tpu_custom_call.1} parent=1 // pred_fallthru
      _
    // Predicated region
    $region14: #{tpu_custom_call.1} parent=1 // pred_check
      _
    $region15: #{tpu_custom_call.1} parent=1 // pred_check_branch
      %18 = sbr.rel (0) target = $region17
    $region16: #{tpu_custom_call.1} parent=1 // pred_region
      _
    $region17: #{tpu_custom_call.1} parent=1 // pred_fallthru
      _
    // Predicated region
    $region18: #{tpu_custom_call.1} parent=1 // pred_check
      _
    $region19: #{tpu_custom_call.1} parent=1 // pred_check_branch
      %20 = sbr.rel (0) target = $region21
    $region20: #{tpu_custom_call.1} parent=1 // pred_region
      _
    $region21: #{tpu_custom_call.1} parent=1 // pred_fallthru
      _
    %v21 = vld [vmem:[%s0] sm:$0xff]
    %v22 = vld [vmem:[%s0 + $0x8] sm:$0xff]
    %v23 = vld [vmem:[%s2] sm:$0xf]
    %v24 = vld [vmem:[%s3] sm:$0xff]
    %v25 = vld [vmem:[%s3 + $0x8] sm:$0xff]
    %v26 = vld [vmem:[%s3 + $0x10] sm:$0xff]
    %v27 = vld [vmem:[%s3 + $0x18] sm:$0xff]
    %v28 = vld [vmem:[%s3 + $0x20] sm:$0xff]
    %v29 = vld [vmem:[%s3 + $0x28] sm:$0xff]
    %v30 = vld [vmem:[%s3 + $0x30] sm:$0xff]
    %v31 = vld [vmem:[%s3 + $0x38] sm:$0xff]
    %v32 = vld [vmem:[%s4] sm:$0xff]
    %v33 = vld [vmem:[%s4 + $0x8] sm:$0xff]
    %v34 = vld [vmem:[%s4 + $0x10] sm:$0xff]
    %v35 = vld [vmem:[%s4 + $0x18] sm:$0xff]
    %v36 = vld [vmem:[%s4 + $0x20] sm:$0xff]
    %v37 = vld [vmem:[%s4 + $0x28] sm:$0xff]
    %v38 = vld [vmem:[%s4 + $0x30] sm:$0xff]
    %v39 = vld [vmem:[%s4 + $0x38] sm:$0xff]
    %v40 = vld [vmem:[%s1] sm:$0x3]
    %v41 = vsub.f32 %v40, 1.0
    %v42 = vmul.f32 %v41, 1000000.0
    %vm43 = vcmask 261120
    %v44 = vsel %vm43, %v21, 0.0
    %45 = vadd.xlane.f32.xlu0 %v44
    %v46 = vpop.xlane.xlu0 %45
    %v47 = vsel %vm43, %v22, 0.0
    %48 = vadd.xlane.f32.xlu0 %v47
    %v49 = vpop.xlane.xlu0 %48
    %v50 = vrcp.pop 32.0
    %v51 = vmul.f32 32.0, %v50
    %v52 = vsub.f32 1.0, %v51
    %v53 = vmul.f32 %v50, %v52
    %v54 = vadd.f32 %v50, %v53
    %vm55 = vweird.f32 %v50
    %v56 = vsel %vm55, %v50, %v54
    %v57 = vmul.f32 %v46, %v56
    %v58 = vmul.f32 %v49, %v56
    %v59 = vsub.f32 %v21, %v57
    %v60 = vsub.f32 %v22, %v58
    %v61 = vmul.f32 %v59, %v59
    %v62 = vmul.f32 %v60, %v60
    %v63 = vsel %vm43, %v61, 0.0
    %64 = vadd.xlane.f32.xlu0 %v63
    %v65 = vpop.xlane.xlu0 %64
    %v66 = vsel %vm43, %v62, 0.0
    %67 = vadd.xlane.f32.xlu0 %v66
    %v68 = vpop.xlane.xlu0 %67
    %v69 = vmul.f32 %v65, %v56
    %v70 = vmul.f32 %v68, %v56
    %v71 = vadd.f32 %v69, 1e-05
    %v72 = vadd.f32 %v70, 1e-05
    %v73 = vrsqrt.pop %v71
    %v74 = vmul.f32 %v73, %v71
    %v75 = vmul.f32 %v74, %v73
    %v76 = vmul.f32 0.5, %v75
    %v77 = vsub.f32 1.5, %v76
    %v78 = vmul.f32 %v73, %v77
    %vm79 = vweird.f32 %v71
    %vm80 = vweird.f32 %v73
    %vm81 = vmor %vm79, %vm80
    %v82 = vsel %vm81, %v73, %v78
    %v83 = vrsqrt.pop %v72
    %v84 = vmul.f32 %v83, %v72
    %v85 = vmul.f32 %v84, %v83
    %v86 = vmul.f32 0.5, %v85
    %v87 = vsub.f32 1.5, %v86
    %v88 = vmul.f32 %v83, %v87
    %vm89 = vweird.f32 %v72
    %vm90 = vweird.f32 %v83
    %vm91 = vmor %vm89, %vm90
    %v92 = vsel %vm91, %v83, %v88
    %v93 = vmul.f32 %v59, %v82
    %v94 = vmul.f32 %v60, %v92
    %v95 = vperm.slane %v23, 0
    %v96 = vmul.f32 %v93, %v95
    %v97 = vmul.f32 %v94, %v95
    %99 = vrot.lane.b32.xlu0 %v95, 96
    %v100 = vpop.permute.xlu0 %99
    %v102 = vadd.f32 %v96, %v100
    %v103 = vadd.f32 %v97, %v100
    %v104 = vperm.slane %v23, 2
    %v106 = vsel %vm43, %v102, 0
    %v109 = vsel %vm43, %v103, 0
    %111 = vmatpush.msra.mxu0 0.0
    %112 = vmatpush.msra.mxu0 0.0
    %113 = vmatpush.msra.mxu0 0.0
    %114 = vmatpush.msra.mxu0 0.0
    %115 = vmatpush.msra.mxu0 0.0
    %116 = vmatpush.msra.mxu0 0.0
    %117 = vmatpush.msra.mxu0 0.0
    %118 = vmatpush.msra.mxu0 0.0
    %119 = vmatpush.msra.mxu0 0.0
    %120 = vmatpush.msra.mxu0 0.0
    %121 = vmatpush.msra.mxu0 0.0
    %122 = vmatpush.msra.mxu0 0.0
    %123 = vmatpush.msra.mxu0 %v30
    %124 = vmatpush.msra.mxu0 %v28
    %125 = vmatpush.msra.mxu0 %v26
    %126 = vmatpush.msra.mxu0 %v24
    %127 = vmatmul.f32.gmra.mxu0 %v106
    %v128 = vpop.f32.mrf.mxu0
    %v129 = vadd.f32 %v104, %v128
    %130 = vmatmul.f32.gmra.mxu0 %v109
    %v131 = vpop.f32.mrf.mxu0
    %v132 = vadd.f32 %v104, %v131
    %133 = vdwg.mxu0
    %135 = vrot.lane.b32.xlu0 %v129, 96
    %v136 = vpop.permute.xlu0 %135
    %vm137 = vcmask 130048
    %v138 = vsel %vm137, %v129, 0
    %v140 = vsel %vm137, %v136, 0
    %142 = vmatpush.xpose.msra.mxu0 0.0
    %143 = vmatpush.xpose.msra.mxu0 0.0
    %144 = vmatpush.xpose.msra.mxu0 0.0
    %145 = vmatpush.xpose.msra.mxu0 0.0
    %146 = vmatpush.xpose.msra.mxu0 0.0
    %147 = vmatpush.xpose.msra.mxu0 0.0
    %148 = vmatpush.xpose.msra.mxu0 0.0
    %149 = vmatpush.xpose.msra.mxu0 0.0
    %150 = vmatpush.xpose.msra.mxu0 0.0
    %151 = vmatpush.xpose.msra.mxu0 0.0
    %152 = vmatpush.xpose.msra.mxu0 0.0
    %153 = vmatpush.xpose.msra.mxu0 0.0
    %154 = vmatpush.xpose.msra.mxu0 0.0
    %155 = vmatpush.xpose.msra.mxu0 0.0
    %156 = vmatpush.xpose.msra.mxu0 0.0
    %157 = vmatpush.xpose.msra.mxu0 %v140
    %158 = vmatmul.f32.gmra.mxu0 %v138
    %v159 = vpop.f32.mrf.mxu0
    %v160 = vadd.f32 0.0, %v159
    %161 = vdwg.mxu0
    %v162 = vmul.f32 %v160, 0.25
    %v163 = vperm.slane %v42, 0
    %v164 = vadd.f32 %v162, %v163
    %165 = vrot.lane.b32.xlu0 %v129, 112
    %v166 = vpop.permute.xlu0 %165
    %167 = vrot.lane.b32.xlu0 %v129, 80
    %v168 = vpop.permute.xlu0 %167
    %v169 = vsel %vm137, %v166, 0
    %v171 = vsel %vm137, %v168, 0
    %173 = vmatpush.xpose.msra.mxu0 0.0
    %174 = vmatpush.xpose.msra.mxu0 0.0
    %175 = vmatpush.xpose.msra.mxu0 0.0
    %176 = vmatpush.xpose.msra.mxu0 0.0
    %177 = vmatpush.xpose.msra.mxu0 0.0
    %178 = vmatpush.xpose.msra.mxu0 0.0
    %179 = vmatpush.xpose.msra.mxu0 0.0
    %180 = vmatpush.xpose.msra.mxu0 0.0
    %181 = vmatpush.xpose.msra.mxu0 0.0
    %182 = vmatpush.xpose.msra.mxu0 0.0
    %183 = vmatpush.xpose.msra.mxu0 0.0
    %184 = vmatpush.xpose.msra.mxu0 0.0
    %185 = vmatpush.xpose.msra.mxu0 0.0
    %186 = vmatpush.xpose.msra.mxu0 0.0
    %187 = vmatpush.xpose.msra.mxu0 0.0
    %188 = vmatpush.xpose.msra.mxu0 %v171
    %189 = vmatmul.f32.gmra.mxu0 %v169
    %v190 = vpop.f32.mrf.mxu0
    %v191 = vadd.f32 0.0, %v190
    %192 = vdwg.mxu0
    %v193 = vmul.f32 %v191, 0.25
    %v194 = vadd.f32 %v193, %v163
    %196 = vrot.lane.b32.xlu0 %v132, 96
    %v197 = vpop.permute.xlu0 %196
    %v198 = vsel %vm137, %v132, 0
    %v200 = vsel %vm137, %v197, 0
    %202 = vmatpush.xpose.msra.mxu0 0.0
    %203 = vmatpush.xpose.msra.mxu0 0.0
    %204 = vmatpush.xpose.msra.mxu0 0.0
    %205 = vmatpush.xpose.msra.mxu0 0.0
    %206 = vmatpush.xpose.msra.mxu0 0.0
    %207 = vmatpush.xpose.msra.mxu0 0.0
    %208 = vmatpush.xpose.msra.mxu0 0.0
    %209 = vmatpush.xpose.msra.mxu0 0.0
    %210 = vmatpush.xpose.msra.mxu0 0.0
    %211 = vmatpush.xpose.msra.mxu0 0.0
    %212 = vmatpush.xpose.msra.mxu0 0.0
    %213 = vmatpush.xpose.msra.mxu0 0.0
    %214 = vmatpush.xpose.msra.mxu0 0.0
    %215 = vmatpush.xpose.msra.mxu0 0.0
    %216 = vmatpush.xpose.msra.mxu0 0.0
    %217 = vmatpush.xpose.msra.mxu0 %v200
    %218 = vmatmul.f32.gmra.mxu0 %v198
    %v219 = vpop.f32.mrf.mxu0
    %v220 = vadd.f32 0.0, %v219
    %221 = vdwg.mxu0
    %v222 = vmul.f32 %v220, 0.25
    %v223 = vperm.slane %v42, 1
    %v224 = vadd.f32 %v222, %v223
    %225 = vrot.lane.b32.xlu0 %v132, 112
    %v226 = vpop.permute.xlu0 %225
    %227 = vrot.lane.b32.xlu0 %v132, 80
    %v228 = vpop.permute.xlu0 %227
    %v229 = vsel %vm137, %v226, 0
    %v231 = vsel %vm137, %v228, 0
    %233 = vmatpush.xpose.msra.mxu0 0.0
    %234 = vmatpush.xpose.msra.mxu0 0.0
    %235 = vmatpush.xpose.msra.mxu0 0.0
    %236 = vmatpush.xpose.msra.mxu0 0.0
    %237 = vmatpush.xpose.msra.mxu0 0.0
    %238 = vmatpush.xpose.msra.mxu0 0.0
    %239 = vmatpush.xpose.msra.mxu0 0.0
    %240 = vmatpush.xpose.msra.mxu0 0.0
    %241 = vmatpush.xpose.msra.mxu0 0.0
    %242 = vmatpush.xpose.msra.mxu0 0.0
    %243 = vmatpush.xpose.msra.mxu0 0.0
    %244 = vmatpush.xpose.msra.mxu0 0.0
    %245 = vmatpush.xpose.msra.mxu0 0.0
    %246 = vmatpush.xpose.msra.mxu0 0.0
    %247 = vmatpush.xpose.msra.mxu0 0.0
    %248 = vmatpush.xpose.msra.mxu0 %v231
    %249 = vmatmul.f32.gmra.mxu0 %v229
    %v250 = vpop.f32.mrf.mxu0
    %v251 = vadd.f32 0.0, %v250
    %252 = vdwg.mxu0
    %v253 = vmul.f32 %v251, 0.25
    %v254 = vadd.f32 %v253, %v223
    %vm255 = vcmask 64512
    %v256 = vsel %vm255, %v164, -inf
    %257 = vmax.xlane.f32.xlu0 %v256
    %v258 = vpop.xlane.xlu0 %257
    %v259 = vsel %vm255, %v194, -inf
    %260 = vmax.xlane.f32.xlu0 %v259
    %v261 = vpop.xlane.xlu0 %260
    %v262 = vsel %vm255, %v224, -inf
    %263 = vmax.xlane.f32.xlu0 %v262
    %v264 = vpop.xlane.xlu0 %263
    %v265 = vsel %vm255, %v254, -inf
    %266 = vmax.xlane.f32.xlu0 %v265
    %v267 = vpop.xlane.xlu0 %266
    %v268 = vsub.f32 %v164, %v258
    %v269 = vsub.f32 %v194, %v261
    %v270 = vsub.f32 %v224, %v264
    %v271 = vsub.f32 %v254, %v267
    %v272 = vmul.f32 %v268, 1.442695
    %v273 = vpow.pop %v272
    %v274 = vmul.f32 %v269, 1.442695
    %v275 = vpow.pop %v274
    %v276 = vmul.f32 %v270, 1.442695
    %v277 = vpow.pop %v276
    %v278 = vmul.f32 %v271, 1.442695
    %v279 = vpow.pop %v278
    %v280 = vsel %vm255, %v273, 0.0
    %281 = vadd.xlane.f32.xlu0 %v280
    %v282 = vpop.xlane.xlu0 %281
    %v283 = vsel %vm255, %v275, 0.0
    %284 = vadd.xlane.f32.xlu0 %v283
    %v285 = vpop.xlane.xlu0 %284
    %v286 = vsel %vm255, %v277, 0.0
    %287 = vadd.xlane.f32.xlu0 %v286
    %v288 = vpop.xlane.xlu0 %287
    %v289 = vsel %vm255, %v279, 0.0
    %290 = vadd.xlane.f32.xlu0 %v289
    %v291 = vpop.xlane.xlu0 %290
    %v292 = vrcp.pop %v282
    %v293 = vmul.f32 %v282, %v292
    %v294 = vsub.f32 1.0, %v293
    %v295 = vmul.f32 %v292, %v294
    %v296 = vadd.f32 %v292, %v295
    %vm297 = vweird.f32 %v282
    %vm298 = vweird.f32 %v292
    %vm299 = vmor %vm297, %vm298
    %v300 = vsel %vm299, %v292, %v296
    %v301 = vand.u32 2147483647, %v282
    %vm302 = vcmp.eq.f32.partialorder %v301, 8.507059e+37
    %v303 = vand.u32 %v282, 2147483648
    %v304 = vor.u32 1.1754944e-38, %v303
    %v305 = vsel %vm302, %v304, %v300
    %v306 = vmul.f32 %v273, %v305
    %v307 = vrcp.pop %v285
    %v308 = vmul.f32 %v285, %v307
    %v309 = vsub.f32 1.0, %v308
    %v310 = vmul.f32 %v307, %v309
    %v311 = vadd.f32 %v307, %v310
    %vm312 = vweird.f32 %v285
    %vm313 = vweird.f32 %v307
    %vm314 = vmor %vm312, %vm313
    %v315 = vsel %vm314, %v307, %v311
    %v316 = vand.u32 2147483647, %v285
    %vm317 = vcmp.eq.f32.partialorder %v316, 8.507059e+37
    %v318 = vand.u32 %v285, 2147483648
    %v319 = vor.u32 1.1754944e-38, %v318
    %v320 = vsel %vm317, %v319, %v315
    %v321 = vmul.f32 %v275, %v320
    %v322 = vrcp.pop %v288
    %v323 = vmul.f32 %v288, %v322
    %v324 = vsub.f32 1.0, %v323
    %v325 = vmul.f32 %v322, %v324
    %v326 = vadd.f32 %v322, %v325
    %vm327 = vweird.f32 %v288
    %vm328 = vweird.f32 %v322
    %vm329 = vmor %vm327, %vm328
    %v330 = vsel %vm329, %v322, %v326
    %v331 = vand.u32 2147483647, %v288
    %vm332 = vcmp.eq.f32.partialorder %v331, 8.507059e+37
    %v333 = vand.u32 %v288, 2147483648
    %v334 = vor.u32 1.1754944e-38, %v333
    %v335 = vsel %vm332, %v334, %v330
    %v336 = vmul.f32 %v277, %v335
    %v337 = vrcp.pop %v291
    %v338 = vmul.f32 %v291, %v337
    %v339 = vsub.f32 1.0, %v338
    %v340 = vmul.f32 %v337, %v339
    %v341 = vadd.f32 %v337, %v340
    %vm342 = vweird.f32 %v291
    %vm343 = vweird.f32 %v337
    %vm344 = vmor %vm342, %vm343
    %v345 = vsel %vm344, %v337, %v341
    %v346 = vand.u32 2147483647, %v291
    %vm347 = vcmp.eq.f32.partialorder %v346, 8.507059e+37
    %v348 = vand.u32 %v291, 2147483648
    %v349 = vor.u32 1.1754944e-38, %v348
    %v350 = vsel %vm347, %v349, %v345
    %v351 = vmul.f32 %v279, %v350
    %352 = vrot.lane.b32.xlu0 %v129, 64
    %v353 = vpop.permute.xlu0 %352
    %v356 = vsel %vm255, %v306, 0
    %358 = vmatpush.msra.mxu0 0.0
    %359 = vmatpush.msra.mxu0 0.0
    %360 = vmatpush.msra.mxu0 0.0
    %361 = vmatpush.msra.mxu0 0.0
    %362 = vmatpush.msra.mxu0 0.0
    %363 = vmatpush.msra.mxu0 0.0
    %364 = vmatpush.msra.mxu0 0.0
    %365 = vmatpush.msra.mxu0 0.0
    %366 = vmatpush.msra.mxu0 0.0
    %367 = vmatpush.msra.mxu0 0.0
    %368 = vmatpush.msra.mxu0 0.0
    %369 = vmatpush.msra.mxu0 0.0
    %370 = vmatpush.msra.mxu0 0.0
    %371 = vmatpush.msra.mxu0 0.0
    %372 = vmatpush.msra.mxu0 0.0
    %373 = vmatpush.msra.mxu0 %v353
    %374 = vmatmul.f32.gmra.mxu0 %v356
    %v375 = vpop.f32.mrf.mxu0
    %v376 = vadd.f32 0.0, %v375
    %377 = vdwg.mxu0
    %378 = vrot.lane.b32.xlu0 %v129, 48
    %v379 = vpop.permute.xlu0 %378
    %v382 = vsel %vm255, %v321, 0
    %384 = vmatpush.msra.mxu0 0.0
    %385 = vmatpush.msra.mxu0 0.0
    %386 = vmatpush.msra.mxu0 0.0
    %387 = vmatpush.msra.mxu0 0.0
    %388 = vmatpush.msra.mxu0 0.0
    %389 = vmatpush.msra.mxu0 0.0
    %390 = vmatpush.msra.mxu0 0.0
    %391 = vmatpush.msra.mxu0 0.0
    %392 = vmatpush.msra.mxu0 0.0
    %393 = vmatpush.msra.mxu0 0.0
    %394 = vmatpush.msra.mxu0 0.0
    %395 = vmatpush.msra.mxu0 0.0
    %396 = vmatpush.msra.mxu0 0.0
    %397 = vmatpush.msra.mxu0 0.0
    %398 = vmatpush.msra.mxu0 0.0
    %399 = vmatpush.msra.mxu0 %v379
    %400 = vmatmul.f32.gmra.mxu0 %v382
    %v401 = vpop.f32.mrf.mxu0
    %v402 = vadd.f32 0.0, %v401
    %403 = vdwg.mxu0
    %405 = vrot.lane.b32.xlu0 %v402, 16
    %v406 = vpop.permute.xlu0 %405
    %v408 = vsel %vm137, %v376, %v406
    %409 = vrot.lane.b32.xlu0 %v132, 64
    %v410 = vpop.permute.xlu0 %409
    %v413 = vsel %vm255, %v336, 0
    %415 = vmatpush.msra.mxu0 0.0
    %416 = vmatpush.msra.mxu0 0.0
    %417 = vmatpush.msra.mxu0 0.0
    %418 = vmatpush.msra.mxu0 0.0
    %419 = vmatpush.msra.mxu0 0.0
    %420 = vmatpush.msra.mxu0 0.0
    %421 = vmatpush.msra.mxu0 0.0
    %422 = vmatpush.msra.mxu0 0.0
    %423 = vmatpush.msra.mxu0 0.0
    %424 = vmatpush.msra.mxu0 0.0
    %425 = vmatpush.msra.mxu0 0.0
    %426 = vmatpush.msra.mxu0 0.0
    %427 = vmatpush.msra.mxu0 0.0
    %428 = vmatpush.msra.mxu0 0.0
    %429 = vmatpush.msra.mxu0 0.0
    %430 = vmatpush.msra.mxu0 %v410
    %431 = vmatmul.f32.gmra.mxu0 %v413
    %v432 = vpop.f32.mrf.mxu0
    %v433 = vadd.f32 0.0, %v432
    %434 = vdwg.mxu0
    %435 = vrot.lane.b32.xlu0 %v132, 48
    %v436 = vpop.permute.xlu0 %435
    %v439 = vsel %vm255, %v351, 0
    %441 = vmatpush.msra.mxu0 0.0
    %442 = vmatpush.msra.mxu0 0.0
    %443 = vmatpush.msra.mxu0 0.0
    %444 = vmatpush.msra.mxu0 0.0
    %445 = vmatpush.msra.mxu0 0.0
    %446 = vmatpush.msra.mxu0 0.0
    %447 = vmatpush.msra.mxu0 0.0
    %448 = vmatpush.msra.mxu0 0.0
    %449 = vmatpush.msra.mxu0 0.0
    %450 = vmatpush.msra.mxu0 0.0
    %451 = vmatpush.msra.mxu0 0.0
    %452 = vmatpush.msra.mxu0 0.0
    %453 = vmatpush.msra.mxu0 0.0
    %454 = vmatpush.msra.mxu0 0.0
    %455 = vmatpush.msra.mxu0 0.0
    %456 = vmatpush.msra.mxu0 %v436
    %457 = vmatmul.f32.gmra.mxu0 %v439
    %v458 = vpop.f32.mrf.mxu0
    %v459 = vadd.f32 0.0, %v458
    %460 = vdwg.mxu0
    %462 = vrot.lane.b32.xlu0 %v459, 16
    %v463 = vpop.permute.xlu0 %462
    %v465 = vsel %vm137, %v433, %v463
    %v466 = vperm.slane %v23, 1
    %471 = vrot.lane.b32.xlu0 %v24, 32
    %v472 = vpop.permute.xlu0 %471
    %473 = vrot.lane.b32.xlu0 %v26, 32
    %v474 = vpop.permute.xlu0 %473
    %475 = vrot.lane.b32.xlu0 %v28, 32
    %v476 = vpop.permute.xlu0 %475
    %477 = vrot.lane.b32.xlu0 %v30, 32
    %v478 = vpop.permute.xlu0 %477
    %v484 = vsel %vm43, %v408, 0
    %v487 = vsel %vm43, %v465, 0
    %489 = vmatpush.msra.mxu0 0.0
    %490 = vmatpush.msra.mxu0 0.0
    %491 = vmatpush.msra.mxu0 0.0
    %492 = vmatpush.msra.mxu0 0.0
    %493 = vmatpush.msra.mxu0 0.0
    %494 = vmatpush.msra.mxu0 0.0
    %495 = vmatpush.msra.mxu0 0.0
    %496 = vmatpush.msra.mxu0 0.0
    %497 = vmatpush.msra.mxu0 0.0
    %498 = vmatpush.msra.mxu0 0.0
    %499 = vmatpush.msra.mxu0 0.0
    %500 = vmatpush.msra.mxu0 0.0
    %501 = vmatpush.msra.mxu0 %v478
    %502 = vmatpush.msra.mxu0 %v476
    %503 = vmatpush.msra.mxu0 %v474
    %504 = vmatpush.msra.mxu0 %v472
    %505 = vmatmul.f32.gmra.mxu0 %v484
    %v506 = vpop.f32.mrf.mxu0
    %v507 = vadd.f32 %v466, %v506
    %508 = vmatmul.f32.gmra.mxu0 %v487
    %v509 = vpop.f32.mrf.mxu0
    %v510 = vadd.f32 %v466, %v509
    %511 = vdwg.mxu0
    %v512 = vadd.f32 %v507, %v21
    %v513 = vadd.f32 %v510, %v22
    %v514 = vsel %vm43, %v512, 0.0
    %515 = vadd.xlane.f32.xlu0 %v514
    %v516 = vpop.xlane.xlu0 %515
    %v517 = vsel %vm43, %v513, 0.0
    %518 = vadd.xlane.f32.xlu0 %v517
    %v519 = vpop.xlane.xlu0 %518
    %v520 = vmul.f32 %v516, %v56
    %v521 = vmul.f32 %v519, %v56
    %v522 = vsub.f32 %v512, %v520
    %v523 = vsub.f32 %v513, %v521
    %v524 = vmul.f32 %v522, %v522
    %v525 = vmul.f32 %v523, %v523
    %v526 = vsel %vm43, %v524, 0.0
    %527 = vadd.xlane.f32.xlu0 %v526
    %v528 = vpop.xlane.xlu0 %527
    %v529 = vsel %vm43, %v525, 0.0
    %530 = vadd.xlane.f32.xlu0 %v529
    %v531 = vpop.xlane.xlu0 %530
    %v532 = vmul.f32 %v528, %v56
    %v533 = vmul.f32 %v531, %v56
    %v534 = vadd.f32 %v532, 1e-05
    %v535 = vadd.f32 %v533, 1e-05
    %v536 = vrsqrt.pop %v534
    %v537 = vmul.f32 %v536, %v534
    %v538 = vmul.f32 %v537, %v536
    %v539 = vmul.f32 0.5, %v538
    %v540 = vsub.f32 1.5, %v539
    %v541 = vmul.f32 %v536, %v540
    %vm542 = vweird.f32 %v534
    %vm543 = vweird.f32 %v536
    %vm544 = vmor %vm542, %vm543
    %v545 = vsel %vm544, %v536, %v541
    %v546 = vrsqrt.pop %v535
    %v547 = vmul.f32 %v546, %v535
    %v548 = vmul.f32 %v547, %v546
    %v549 = vmul.f32 0.5, %v548
    %v550 = vsub.f32 1.5, %v549
    %v551 = vmul.f32 %v546, %v550
    %vm552 = vweird.f32 %v535
    %vm553 = vweird.f32 %v546
    %vm554 = vmor %vm552, %vm553
    %v555 = vsel %vm554, %v546, %v551
    %v556 = vmul.f32 %v522, %v545
    %v557 = vmul.f32 %v523, %v555
    %558 = vrot.lane.b32.xlu0 %v95, 64
    %v559 = vpop.permute.xlu0 %558
    %v561 = vmul.f32 %v556, %v559
    %v562 = vmul.f32 %v557, %v559
    %563 = vrot.lane.b32.xlu0 %v95, 32
    %v564 = vpop.permute.xlu0 %563
    %v566 = vadd.f32 %v561, %v564
    %v567 = vadd.f32 %v562, %v564
    %v568 = vperm.slane %v23, 3
    %v570 = vsel %vm43, %v566, 0
    %v573 = vsel %vm43, %v567, 0
    %575 = vmatpush.msra.mxu0 0.0
    %576 = vmatpush.msra.mxu0 0.0
    %577 = vmatpush.msra.mxu0 0.0
    %578 = vmatpush.msra.mxu0 0.0
    %579 = vmatpush.msra.mxu0 0.0
    %580 = vmatpush.msra.mxu0 0.0
    %581 = vmatpush.msra.mxu0 0.0
    %582 = vmatpush.msra.mxu0 0.0
    %583 = vmatpush.msra.mxu0 0.0
    %584 = vmatpush.msra.mxu0 0.0
    %585 = vmatpush.msra.mxu0 0.0
    %586 = vmatpush.msra.mxu0 0.0
    %587 = vmatpush.msra.mxu0 %v31
    %588 = vmatpush.msra.mxu0 %v29
    %589 = vmatpush.msra.mxu0 %v27
    %590 = vmatpush.msra.mxu0 %v25
    %591 = vmatmul.f32.gmra.mxu0 %v570
    %v592 = vpop.f32.mrf.mxu0
    %v593 = vadd.f32 %v568, %v592
    %594 = vmatmul.f32.gmra.mxu0 %v573
    %v595 = vpop.f32.mrf.mxu0
    %v596 = vadd.f32 %v568, %v595
    %597 = vdwg.mxu0
    %v598 = vmax.f32 %v593, 0.0
    %v599 = vmax.f32 %v596, 0.0
    %601 = vrot.lane.b32.xlu0 %v466, 96
    %v602 = vpop.permute.xlu0 %601
    %vm604 = vcmask 523264
    %v606 = vsel %vm604, %v598, 0
    %v609 = vsel %vm604, %v599, 0
    %611 = vmatpush.msra.mxu0 0.0
    %612 = vmatpush.msra.mxu0 0.0
    %613 = vmatpush.msra.mxu0 0.0
    %614 = vmatpush.msra.mxu0 0.0
    %615 = vmatpush.msra.mxu0 0.0
    %616 = vmatpush.msra.mxu0 0.0
    %617 = vmatpush.msra.mxu0 0.0
    %618 = vmatpush.msra.mxu0 0.0
    %619 = vmatpush.msra.mxu0 %v39
    %620 = vmatpush.msra.mxu0 %v38
    %621 = vmatpush.msra.mxu0 %v37
    %622 = vmatpush.msra.mxu0 %v36
    %623 = vmatpush.msra.mxu0 %v35
    %624 = vmatpush.msra.mxu0 %v34
    %625 = vmatpush.msra.mxu0 %v33
    %626 = vmatpush.msra.mxu0 %v32
    %627 = vmatmul.f32.gmra.mxu0 %v606
    %v628 = vpop.f32.mrf.mxu0
    %v629 = vadd.f32 %v602, %v628
    %630 = vmatmul.f32.gmra.mxu0 %v609
    %v631 = vpop.f32.mrf.mxu0
    %v632 = vadd.f32 %v602, %v631
    %633 = vdwg.mxu0
    %v634 = vadd.f32 %v629, %v512
    %v635 = vadd.f32 %v632, %v513
    %636 = vst.msk [vmem:[#allocation2] sm:$0xff] %vm43, %v634
    %637 = vst.msk [vmem:[#allocation2 + $0x8] sm:$0xff] %vm43, %v635
    // Predicated region
    $region22: #{tpu_custom_call.1} parent=1 // pred_check
      _
    $region23: #{tpu_custom_call.1} parent=1 // pred_check_branch
      %639 = sbr.rel (0) target = $region25
    $region24: #{tpu_custom_call.1} parent=1 // pred_region
      %641 = vsyncadd [#allocation3], 0
      %s642 = sshll.u32 [#allocation2], 4
      %s643 = int_to_ptr.vmem [resolvable:$true] %s642
      %s644 = sshll.u32 %s5, 4
      %s645 = int_to_ptr.hbm [resolvable:$true] %s644
      %650 = dma.vmem_to_hbm [thread:$0]  %s643, 256, %s645, [#allocation3], 128, 128, 8
    $region25: #{tpu_custom_call.1} parent=1 // pred_fallthru
      _
    // Predicated region
    $region26: #{tpu_custom_call.1} parent=1 // pred_check
      _
    $region27: #{tpu_custom_call.1} parent=1 // pred_check_branch
      %652 = sbr.rel (0) target = $region29
    $region28: #{tpu_custom_call.1} parent=1 // pred_region
      %654 = dma.done [#allocation3], 256
    $region29: #{tpu_custom_call.1} parent=1 // pred_fallthru
      _
    %655 = vsyncpa [#allocation3], 1

</llo_original>
